<compile_context>
chip_gen: v7x
topology: tpu7x:2x2x1
jax: 0.10.0
libtpu: 0.0.40
codegen_flags: <defaults>
</compile_context>

<pallas_src>
import functools

import jax
import jax.numpy as jnp
from jax import lax
from jax.experimental import pallas as pl
from jax.experimental.pallas import tpu as pltpu

EPS = 1e-5  # nn.LayerNorm default eps


def _round_up(n, m):
    return (n + m - 1) // m * m


def _vmem_limit_bytes():
    """Scoped-VMEM budget for this kernel, derived from physical capacity."""
    phys = 64 * 1024 * 1024  # conservative default (v7x per-TC physical VMEM)
    try:
        phys = int(pltpu.get_tpu_info().vmem_capacity_bytes)
    except Exception:
        pass
    # v7x (64 MiB) -> 48 MiB; v5e/v6e (128 MiB) -> 96 MiB.
    return max(48 * 1024 * 1024, phys - 32 * 1024 * 1024)


def _prenorm_linear_kernel(x_ref, g_ref, b_ref, w_ref, wb_ref, o_ref, n_ref):
    """LayerNorm(x) (cached per row tile) then y = normed @ W[:, col_tile] + bias."""
    # Compute LayerNorm only once per row tile; the x block is resident across
    # the (sequential) j sweep, and the cast result lives in the n_ref scratch.
    @pl.when(pl.program_id(1) == 0)
    def _():
        x = x_ref[...].astype(jnp.float32)                       # (tm, D)
        # One-pass moments: var = E[x^2] - mean^2 (fewer live f32 temporaries).
        mean = jnp.mean(x, axis=-1, keepdims=True)
        mean_sq = jnp.mean(x * x, axis=-1, keepdims=True)
        inv = lax.rsqrt(jnp.maximum(mean_sq - mean * mean, 0.0) + EPS)
        normed = (x - mean) * (inv * g_ref[...].astype(jnp.float32)) \
            + b_ref[...].astype(jnp.float32)
        n_ref[...] = normed.astype(n_ref.dtype)

    # MXU matmul in the weight dtype (bf16 when applicable), f32 accumulation.
    y = jnp.dot(n_ref[...], w_ref[...], preferred_element_type=jnp.float32)
    o_ref[...] = (y + wb_ref[...].astype(jnp.float32)).astype(o_ref.dtype)


@functools.partial(
    jax.jit, static_argnames=("rows_per_block", "cols_per_block", "mxu_bf16"))
def prenorm_linear(x, gamma, beta, w, wb, *, rows_per_block=None,
                   cols_per_block=None, mxu_bf16=True):
    """PreNorm(dim, Linear(dim, dim)).forward(x) for x of shape (B, N, D)."""
    B, N, D = x.shape
    R = B * N
    x2 = x.reshape(R, D)

    # MXU operands in bf16 (f32 accumulation, f32 LN statistics): bf16-native
    # MXU on v5e/v6e/v7x; halves W HBM traffic and its VMEM footprint.
    if mxu_bf16 and w.dtype == jnp.float32:
        w_mxu = w.astype(jnp.bfloat16)
    else:
        w_mxu = w
    mxu_dtype = w_mxu.dtype

    x_it = jnp.dtype(x.dtype).itemsize
    w_it = jnp.dtype(mxu_dtype).itemsize
    o_it = x_it

    # --- Row tile ---------------------------------------------------------
    row_gran = 16 if x_it == 2 else 8        # sublane packing granularity
    if rows_per_block is None:
        rows_per_block = 512 if x_it == 2 else 256
    tm = _round_up(min(rows_per_block, _round_up(R, row_gran)), row_gran)
    # Shrink tm when padding waste approaches the tile height.
    while tm > row_gran and (_round_up(R, tm) - R) > tm // 2:
        tm = _round_up(tm // 2, row_gran)
    # Give both TensorCores (v7x) at least one row tile each; no-op cost on 1-TC.
    if _round_up(R, tm) // tm < 2 and tm >= 2 * row_gran:
        tm = _round_up(tm // 2, row_gran)
    R_pad = _round_up(R, tm)
    if R_pad != R:
        # Padded rows are finite (LayerNorm(0) -> beta, then beta @ W + wb) and
        # are sliced off below — no NaNs, no effect on real rows.
        x2 = jnp.pad(x2, ((0, R_pad - R), (0, 0)))
    n_row = R_pad // tm

    # --- Output-column tile of W (budget-driven; v7x has 64 MiB VMEM/TC) ---
    vmem_limit = _vmem_limit_bytes()

    def vmem_needed(tn_):
        resident = (tn_ == D)
        w_bufs = 1 if resident else 2            # single-buffer resident W
        return (w_bufs * D * tn_ * w_it          # W block(s)
                + 2 * tm * D * x_it              # x double-buffer
                + 2 * tm * tn_ * o_it            # out double-buffer
                + tm * D * w_it                  # cached normed scratch
                + 3 * tm * D * 4                 # live f32 LN temporaries
                + 4 * D * 4                      # gamma/beta/bias
                + 2 * 1024 * 1024)               # Mosaic internal scratch slack

    if cols_per_block is not None:
        tn = cols_per_block
        assert D % tn == 0, "cols_per_block must divide D"
    else:
        # Prefer the whole weight resident; otherwise lane-dense column tiles.
        cands = [D] + [c for c in (2048, 1024, 512, 256, 128)
                       if c < D and D % c == 0]
        tn = cands[-1]
        for c in cands:
            if vmem_needed(c) <= vmem_limit:
                tn = c
                break
        # TODO(synk): for D so large that even tn=128 f32 blows VMEM, add a K-tile
        #             grid axis with an f32 accumulator (pl.when init/finalize).
    n_col = D // tn

    g2 = gamma.reshape(1, D)
    b2 = beta.reshape(1, D)
    wb2 = wb.reshape(1, D)

    # Single-buffer operands whose block index never changes.
    invariant = pl.Buffered(1)
    if n_col == 1:
        w_spec = pl.BlockSpec((D, tn), lambda i, j: (0, 0), pipeline_mode=invariant)
        wb_spec = pl.BlockSpec((1, tn), lambda i, j: (0, 0), pipeline_mode=invariant)
    else:
        w_spec = pl.BlockSpec((D, tn), lambda i, j: (0, j))
        wb_spec = pl.BlockSpec((1, tn), lambda i, j: (0, j))

    # Honest traffic estimate: W is re-streamed once per row tile unless resident.
    w_passes = 1 if n_col == 1 else n_row
    cost = pl.CostEstimate(
        flops=int(2 * R_pad * D * D + 8 * R_pad * D),
        transcendentals=int(R_pad),
        bytes_accessed=int(R_pad * D * x_it + R_pad * D * o_it
                           + w_passes * D * D * w_it + 4 * D * 4),
    )

    out = pl.pallas_call(
        _prenorm_linear_kernel,
        out_shape=jax.ShapeDtypeStruct((R_pad, D), x.dtype),
        grid_spec=pltpu.PrefetchScalarGridSpec(
            num_scalar_prefetch=0,
            grid=(n_row, n_col),
            in_specs=[
                pl.BlockSpec((tm, D), lambda i, j: (i, 0)),   # x rows (resident over j)
                pl.BlockSpec((1, D), lambda i, j: (0, 0),
                             pipeline_mode=invariant),        # gamma
                pl.BlockSpec((1, D), lambda i, j: (0, 0),
                             pipeline_mode=invariant),        # beta
                w_spec,                                        # fn weight (D, tn)
                wb_spec,                                       # fn bias   (1, tn)
            ],
            out_specs=pl.BlockSpec((tm, tn), lambda i, j: (i, j)),
            scratch_shapes=[pltpu.VMEM((tm, D), mxu_dtype)],   # cached normed tile
        ),
        compiler_params=pltpu.CompilerParams(
            # i: row tiles split across TensorCores; j: sequential so the cached
            # normed tile stays valid for the whole column sweep.
            dimension_semantics=("parallel", "arbitrary"),
            vmem_limit_bytes=int(vmem_limit),
        ),
        cost_estimate=cost,
    )(x2, g2, b2, w_mxu, wb2)

    if R_pad != R:
        out = out[:R]
    return out.reshape(B, N, D)


def _reference(x, gamma, beta, w, wb):
    xf = x.astype(jnp.float32)
    mean = jnp.mean(xf, axis=-1, keepdims=True)
    var = jnp.mean((xf - mean) ** 2, axis=-1, keepdims=True)
    normed = (xf - mean) / jnp.sqrt(var + EPS) * gamma + beta
    return jnp.matmul(normed, w, precision=lax.Precision.HIGHEST) + wb


if __name__ == "__main__":
    key = jax.random.PRNGKey(0)
    kx, kw, kb, kx2 = jax.random.split(key, 4)

    B, N, D = 2, 8, 32  # batch, sequence, hidden (dim)
    x = jax.random.normal(kx, (B, N, D), dtype=jnp.float32)
    # nn.LayerNorm(dim) params at init: weight=1, bias=0 (deterministic).
    gamma = jnp.ones((D,), jnp.float32)
    beta = jnp.zeros((D,), jnp.float32)
    # Deterministic weights for the wrapped fn = Linear(dim, dim).
    w = jax.random.normal(kw, (D, D), dtype=jnp.float32) * 0.02
    wb = jax.random.normal(kb, (D,), dtype=jnp.float32) * 0.02

    out = jax.block_until_ready(prenorm_linear(x, gamma, beta, w, wb))
    ref = _reference(x, gamma, beta, w, wb)
    assert out.shape == (B, N, D)
    # Tolerance covers bf16 MXU operands (f32 accumulation) vs the f32 reference.
    assert jnp.allclose(out, ref, atol=5e-3, rtol=5e-3), "mismatch vs reference"

    # Ragged row count (B*N not a multiple of the row tile) exercises padding
    # and the two-row-tile split.
    B2, N2 = 2, 13
    x_r = jax.random.normal(kx2, (B2, N2, D), dtype=jnp.float32)
    out2 = jax.block_until_ready(prenorm_linear(x_r, gamma, beta, w, wb))
    ref2 = _reference(x_r, gamma, beta, w, wb)
    assert out2.shape == (B2, N2, D)
    assert jnp.allclose(out2, ref2, atol=5e-3, rtol=5e-3), "mismatch vs reference (ragged)"

    print("KERNEL_OK")
</pallas_src>

<mosaic_0001>
module attributes {stable_mosaic.version = 11 : i64} {
  func.func @_prenorm_linear_kernel(%arg0: i32, %arg1: i32, %arg2: memref<8x32xf32, #tpu.memory_space<vmem>>, %arg3: memref<1x32xf32, #tpu.memory_space<vmem>>, %arg4: memref<1x32xf32, #tpu.memory_space<vmem>>, %arg5: memref<32x32xbf16, #tpu.memory_space<vmem>>, %arg6: memref<1x32xf32, #tpu.memory_space<vmem>>, %arg7: memref<8x32xf32, #tpu.memory_space<vmem>>, %arg8: memref<8x32xbf16, #tpu.memory_space<vmem>>) attributes {dimension_semantics = [#tpu.dimension_semantics<parallel>, #tpu.dimension_semantics<arbitrary>], iteration_bounds = array<i64: 2, 1>, scalar_prefetch = 0 : i64, scratch_operands = 1 : i64, tpu.core_type = #tpu.core_type<tc>, window_params = [{transform_indices = @transform_0, window_bounds = array<i64: 8, 32>}, {pipeline_mode = #tpu.pipeline_mode<synchronous>, transform_indices = @transform_1, window_bounds = array<i64: 1, 32>}, {pipeline_mode = #tpu.pipeline_mode<synchronous>, transform_indices = @transform_2, window_bounds = array<i64: 1, 32>}, {pipeline_mode = #tpu.pipeline_mode<synchronous>, transform_indices = @transform_3, window_bounds = array<i64: 32, 32>}, {pipeline_mode = #tpu.pipeline_mode<synchronous>, transform_indices = @transform_4, window_bounds = array<i64: 1, 32>}, {transform_indices = @transform_5, window_bounds = array<i64: 8, 32>}]} {
    %c0_i32 = arith.constant 0 : i32
    %0 = arith.cmpi eq, %arg1, %c0_i32 : i32
    %1 = arith.extui %0 : i1 to i32
    %c0_i32_0 = arith.constant 0 : i32
    %2 = arith.cmpi ne, %1, %c0_i32_0 : i32
    scf.if %2 {
      %c0_8 = arith.constant 0 : index
      %c0_9 = arith.constant 0 : index
      %10 = vector.load %arg2[%c0_8, %c0_9] : memref<8x32xf32, #tpu.memory_space<vmem>>, vector<8x32xf32>
      %cst_10 = arith.constant dense<0.000000e+00> : vector<8xf32>
      %11 = vector.multi_reduction <add>, %10, %cst_10 [1] : vector<8x32xf32> to vector<8xf32>
      %12 = vector.shape_cast %11 : vector<8xf32> to vector<8x1xf32>
      %cst_11 = arith.constant 3.200000e+01 : f32
      %13 = vector.broadcast %cst_11 : f32 to vector<8x1xf32>
      %14 = arith.divf %12, %13 : vector<8x1xf32>
      %15 = arith.mulf %10, %10 : vector<8x32xf32>
      %cst_12 = arith.constant dense<0.000000e+00> : vector<8xf32>
      %16 = vector.multi_reduction <add>, %15, %cst_12 [1] : vector<8x32xf32> to vector<8xf32>
      %17 = vector.shape_cast %16 : vector<8xf32> to vector<8x1xf32>
      %cst_13 = arith.constant 3.200000e+01 : f32
      %18 = vector.broadcast %cst_13 : f32 to vector<8x1xf32>
      %19 = arith.divf %17, %18 : vector<8x1xf32>
      %20 = arith.mulf %14, %14 : vector<8x1xf32>
      %21 = arith.subf %19, %20 : vector<8x1xf32>
      %cst_14 = arith.constant 0.000000e+00 : f32
      %22 = vector.broadcast %cst_14 : f32 to vector<8x1xf32>
      %23 = arith.maximumf %21, %22 : vector<8x1xf32>
      %cst_15 = arith.constant 9.99999974E-6 : f32
      %24 = vector.broadcast %cst_15 : f32 to vector<8x1xf32>
      %25 = arith.addf %23, %24 : vector<8x1xf32>
      %26 = math.rsqrt %25 : vector<8x1xf32>
      %27 = vector.broadcast %14 : vector<8x1xf32> to vector<8x32xf32>
      %28 = arith.subf %10, %27 : vector<8x32xf32>
      %c0_16 = arith.constant 0 : index
      %c0_17 = arith.constant 0 : index
      %29 = vector.load %arg3[%c0_16, %c0_17] : memref<1x32xf32, #tpu.memory_space<vmem>>, vector<1x32xf32>
      %30 = vector.broadcast %26 : vector<8x1xf32> to vector<8x32xf32>
      %31 = vector.broadcast %29 : vector<1x32xf32> to vector<8x32xf32>
      %32 = arith.mulf %30, %31 : vector<8x32xf32>
      %33 = arith.mulf %28, %32 : vector<8x32xf32>
      %c0_18 = arith.constant 0 : index
      %c0_19 = arith.constant 0 : index
      %34 = vector.load %arg4[%c0_18, %c0_19] : memref<1x32xf32, #tpu.memory_space<vmem>>, vector<1x32xf32>
      %35 = vector.broadcast %34 : vector<1x32xf32> to vector<8x32xf32>
      %36 = arith.addf %33, %35 : vector<8x32xf32>
      %37 = arith.truncf %36 : vector<8x32xf32> to vector<8x32xbf16>
      %c0_20 = arith.constant 0 : index
      %c0_21 = arith.constant 0 : index
      %38 = vector.load %arg8[%c0_20, %c0_21] : memref<8x32xbf16, #tpu.memory_space<vmem>>, vector<8x32xbf16>
      tpu.vector_store %arg8[%c0_20, %c0_21], %37 {strides = array<i32>} : memref<8x32xbf16, #tpu.memory_space<vmem>>, vector<8x32xbf16>,
    } else {
    }
    %c0 = arith.constant 0 : index
    %c0_1 = arith.constant 0 : index
    %3 = vector.load %arg8[%c0, %c0_1] : memref<8x32xbf16, #tpu.memory_space<vmem>>, vector<8x32xbf16>
    %c0_2 = arith.constant 0 : index
    %c0_3 = arith.constant 0 : index
    %4 = vector.load %arg5[%c0_2, %c0_3] : memref<32x32xbf16, #tpu.memory_space<vmem>>, vector<32x32xbf16>
    %cst = arith.constant dense<0.000000e+00> : vector<8x32xf32>
    %5 = tpu.matmul %3, %4, %cst {dimension_numbers = #tpu.dot_dimension_numbers<[1], [0], [0], [1], [0, 0, 1, 1], [], []>} : vector<8x32xbf16>, vector<32x32xbf16>, vector<8x32xf32> -> vector<8x32xf32>
    %c0_4 = arith.constant 0 : index
    %c0_5 = arith.constant 0 : index
    %6 = vector.load %arg6[%c0_4, %c0_5] : memref<1x32xf32, #tpu.memory_space<vmem>>, vector<1x32xf32>
    %7 = vector.broadcast %6 : vector<1x32xf32> to vector<8x32xf32>
    %8 = arith.addf %5, %7 : vector<8x32xf32>
    %c0_6 = arith.constant 0 : index
    %c0_7 = arith.constant 0 : index
    %9 = vector.load %arg7[%c0_6, %c0_7] : memref<8x32xf32, #tpu.memory_space<vmem>>, vector<8x32xf32>
    tpu.vector_store %arg7[%c0_6, %c0_7], %8 {strides = array<i32>} : memref<8x32xf32, #tpu.memory_space<vmem>>, vector<8x32xf32>,
    return
  }
  func.func @transform_0(%arg0: i32, %arg1: i32) -> (i32, i32) {
    %c0_i32 = arith.constant 0 : i32
    %c0_i32_0 = arith.constant 0 : i32
    return %arg0, %c0_i32 : i32, i32
  }
  func.func @transform_1(%arg0: i32, %arg1: i32) -> (i32, i32) {
    %c0_i32 = arith.constant 0 : i32
    %c0_i32_0 = arith.constant 0 : i32
    %c0_i32_1 = arith.constant 0 : i32
    return %c0_i32, %c0_i32_0 : i32, i32
  }
  func.func @transform_2(%arg0: i32, %arg1: i32) -> (i32, i32) {
    %c0_i32 = arith.constant 0 : i32
    %c0_i32_0 = arith.constant 0 : i32
    %c0_i32_1 = arith.constant 0 : i32
    return %c0_i32, %c0_i32_0 : i32, i32
  }
  func.func @transform_3(%arg0: i32, %arg1: i32) -> (i32, i32) {
    %c0_i32 = arith.constant 0 : i32
    %c0_i32_0 = arith.constant 0 : i32
    %c0_i32_1 = arith.constant 0 : i32
    return %c0_i32, %c0_i32_0 : i32, i32
  }
  func.func @transform_4(%arg0: i32, %arg1: i32) -> (i32, i32) {
    %c0_i32 = arith.constant 0 : i32
    %c0_i32_0 = arith.constant 0 : i32
    %c0_i32_1 = arith.constant 0 : i32
    return %c0_i32, %c0_i32_0 : i32, i32
  }
  func.func @transform_5(%arg0: i32, %arg1: i32) -> (i32, i32) {
    %c0_i32 = arith.constant 0 : i32
    return %arg0, %arg1 : i32, i32
  }
}

</mosaic_0001>

<llo_original>
// kernel: prenorm_linear.1
$region0: #{prenorm_linear.1}
  #allocation0 [shape = 'u32[]', space=smem, size = 0x4, offset = 0x4, fixed_abs, tag = 'smem constant byte address 0x4 - core index']
  #allocation1 [shape = 'u32[144,128]{1,0:T(1,128)}', space=vmem, size = 0x12000, scoped, tag = 'internal scratch']
  #allocation2 [shape = 'bf16[8,32]{1,0:T(8,128)(2,1)}', space=vmem, size = 0x800, scoped, tag = 'scratch operand']
  %s0 = inlined_call_operand.vmem [shape: f32[16,32], index: 0, kind: input, shape index: {}]
  %s1 = inlined_call_operand.vmem [shape: f32[1,32], index: 1, kind: input, shape index: {}]
  %s2 = inlined_call_operand.vmem [shape: f32[1,32], index: 2, kind: input, shape index: {}]
  %s3 = inlined_call_operand.vmem [shape: bf16[32,32], index: 3, kind: input, shape index: {}]
  %s4 = inlined_call_operand.vmem [shape: f32[1,32], index: 4, kind: input, shape index: {}]
  %s5 = inlined_call_operand.hbm [shape: f32[16,32], index: 5, kind: output, shape index: {}]
  %s6 = sld [smem:[#allocation0]]
  $region57: #{prenorm_linear.1} parent=0
    _
  %s8 = ssub.s32 1, %s6
  %s9 = scalar_select 0, %s8, %s6
  $region1: #{prenorm_linear.1} parent=0
    #allocation3 [shape = 'u8[8192]{0}', space=vmem, size = 0x2000, scoped, tag = 'output window, operand 0']
    #allocation4 [shape = 's32[2]{0}', space=sflag, size = 0x8, scoped, tag = 'scoped memory for prenorm_linear.1']
    %10 = vsyncpa [#allocation4], 0
    %s11 = scalar_lea.sflag [#allocation4], 1
    %12 = vsyncpa %s11, 0
    loop: start=0, step=1, limit=4
    $region2: #{prenorm_linear.1} parent=1 // loop_pre_header
      _
    $region3: #{prenorm_linear.1} parent=1 // loop_header
      %s14 = sphi 0, %s18
      %p15 = scmp.ge.s32.totalorder %s14, 4
      %s21 = sphi 0, %s33
      %s22 = sphi 0, %s29
      %s23 = sphi 0, %s21
      %s24 = sphi 0, %s22
      %s25 = sphi 0, %s23
      %s26 = sphi 0, %s24
      %s36 = sphi 0, %s38
      %s39 = sphi 0, %s36
      %s40 = sphi 0, %s39
      %s56 = sphi 0, %s40
      %s60 = sphi 0, %s60
      %s62 = sphi 0, %s60
      %s63 = sphi 0, %s62
      %s77 = sphi 0, %s63
      %s81 = sphi 0, %s81
      %s83 = sphi 0, %s81
      %s84 = sphi 0, %s83
      %s98 = sphi 0, %s84
      %s102 = sphi 0, %s102
      %s104 = sphi 0, %s102
      %s105 = sphi 0, %s104
      %s119 = sphi 0, %s105
      %s123 = sphi 0, %s123
      %s125 = sphi 0, %s123
      %s126 = sphi 0, %s125
      %s140 = sphi 0, %s126
      %s148 = sphi 0, %s150
      %s151 = sphi 0, %s148
      %s152 = sphi 0, %s151
      %s168 = sphi 0, %s152
    $region4: #{prenorm_linear.1} parent=1 // loop_header_branch
      %17 = sbr.rel (%p15) target = $region8
    $region5: #{prenorm_linear.1} parent=1 // loop_body
      %s19 = ssub.s32 %s14, 1
      %s20 = ssub.s32 %s14, 2
      %s27 = sadd.s32 1, %s22
      %p28 = scmp.ge.s32.totalorder %s27, 1
      %s29 = scalar_select %p28, 0, %s27
      %s30 = sadd.s32 1, %s21
      %s31 = scalar_select %p28, %s30, %s21
      %p32 = scmp.ge.s32.totalorder %s31, 2
      %s33 = scalar_select %p32, 0, %s31
      %s34 = ssub.s32 %s21, %s33
      %p35 = scmp.eq.s32.totalorder %s34, 0
      %s37 = sadd.s32 %s36, 1
      %s38 = scalar_select %p35, %s36, %s37
      %p41 = pneg %p35
      %p42 = scmp.eq.s32.totalorder %s14, 1
      %p43 = por %p41, %p42
      %p44 = scmp.ne.s32.totalorder %s36, %s39
      %p45 = scmp.eq.s32.totalorder %s14, 0
      %p46 = por %p44, %p45
      %p47 = scmp.ne.s32.totalorder %s36, %s39
      %p48 = scmp.eq.s32.totalorder %s19, 1
      %p49 = por %p47, %p48
      %p50 = scmp.ne.s32.totalorder %s39, %s40
      %p51 = scmp.eq.s32.totalorder %s19, 0
      %p52 = por %p50, %p51
      %p53 = scmp.ne.s32.totalorder %s39, %s40
      %p54 = scmp.eq.s32.totalorder %s20, 1
      %p55 = por %p53, %p54
      %p57 = scmp.ne.s32.totalorder %s40, %s56
      %p58 = scmp.eq.s32.totalorder %s20, 0
      %p59 = por %p57, %p58
      %s61 = sadd.s32 %s60, 1
      %p64 = scmp.eq.s32.totalorder %s14, 1
      %p65 = scmp.ne.s32.totalorder %s60, %s62
      %p66 = scmp.eq.s32.totalorder %s14, 0
      %p67 = por %p65, %p66
      %p68 = scmp.ne.s32.totalorder %s60, %s62
      %p69 = scmp.eq.s32.totalorder %s19, 1
      %p70 = por %p68, %p69
      %p71 = scmp.ne.s32.totalorder %s62, %s63
      %p72 = scmp.eq.s32.totalorder %s19, 0
      %p73 = por %p71, %p72
      %p74 = scmp.ne.s32.totalorder %s62, %s63
      %p75 = scmp.eq.s32.totalorder %s20, 1
      %p76 = por %p74, %p75
      %p78 = scmp.ne.s32.totalorder %s63, %s77
      %p79 = scmp.eq.s32.totalorder %s20, 0
      %p80 = por %p78, %p79
      %s82 = sadd.s32 %s81, 1
      %p85 = scmp.eq.s32.totalorder %s14, 1
      %p86 = scmp.ne.s32.totalorder %s81, %s83
      %p87 = scmp.eq.s32.totalorder %s14, 0
      %p88 = por %p86, %p87
      %p89 = scmp.ne.s32.totalorder %s81, %s83
      %p90 = scmp.eq.s32.totalorder %s19, 1
      %p91 = por %p89, %p90
      %p92 = scmp.ne.s32.totalorder %s83, %s84
      %p93 = scmp.eq.s32.totalorder %s19, 0
      %p94 = por %p92, %p93
      %p95 = scmp.ne.s32.totalorder %s83, %s84
      %p96 = scmp.eq.s32.totalorder %s20, 1
      %p97 = por %p95, %p96
      %p99 = scmp.ne.s32.totalorder %s84, %s98
      %p100 = scmp.eq.s32.totalorder %s20, 0
      %p101 = por %p99, %p100
      %s103 = sadd.s32 %s102, 1
      %p106 = scmp.eq.s32.totalorder %s14, 1
      %p107 = scmp.ne.s32.totalorder %s102, %s104
      %p108 = scmp.eq.s32.totalorder %s14, 0
      %p109 = por %p107, %p108
      %p110 = scmp.ne.s32.totalorder %s102, %s104
      %p111 = scmp.eq.s32.totalorder %s19, 1
      %p112 = por %p110, %p111
      %p113 = scmp.ne.s32.totalorder %s104, %s105
      %p114 = scmp.eq.s32.totalorder %s19, 0
      %p115 = por %p113, %p114
      %p116 = scmp.ne.s32.totalorder %s104, %s105
      %p117 = scmp.eq.s32.totalorder %s20, 1
      %p118 = por %p116, %p117
      %p120 = scmp.ne.s32.totalorder %s105, %s119
      %p121 = scmp.eq.s32.totalorder %s20, 0
      %p122 = por %p120, %p121
      %s124 = sadd.s32 %s123, 1
      %p127 = scmp.eq.s32.totalorder %s14, 1
      %p128 = scmp.ne.s32.totalorder %s123, %s125
      %p129 = scmp.eq.s32.totalorder %s14, 0
      %p130 = por %p128, %p129
      %p131 = scmp.ne.s32.totalorder %s123, %s125
      %p132 = scmp.eq.s32.totalorder %s19, 1
      %p133 = por %p131, %p132
      %p134 = scmp.ne.s32.totalorder %s125, %s126
      %p135 = scmp.eq.s32.totalorder %s19, 0
      %p136 = por %p134, %p135
      %p137 = scmp.ne.s32.totalorder %s125, %s126
      %p138 = scmp.eq.s32.totalorder %s20, 1
      %p139 = por %p137, %p138
      %p141 = scmp.ne.s32.totalorder %s126, %s140
      %p142 = scmp.eq.s32.totalorder %s20, 0
      %p143 = por %p141, %p142
      %s144 = ssub.s32 %s21, %s33
      %s145 = ssub.s32 %s22, %s29
      %s146 = sor.u32 %s144, %s145
      %p147 = scmp.eq.s32.totalorder %s146, 0
      %s149 = sadd.s32 %s148, 1
      %s150 = scalar_select %p147, %s148, %s149
      %p153 = pneg %p147
      %p154 = scmp.eq.s32.totalorder %s14, 1
      %p155 = por %p153, %p154
      %p156 = scmp.ne.s32.totalorder %s148, %s151
      %p157 = scmp.eq.s32.totalorder %s14, 0
      %p158 = por %p156, %p157
      %p159 = scmp.ne.s32.totalorder %s148, %s151
      %p160 = scmp.eq.s32.totalorder %s19, 1
      %p161 = por %p159, %p160
      %p162 = scmp.ne.s32.totalorder %s151, %s152
      %p163 = scmp.eq.s32.totalorder %s19, 0
      %p164 = por %p162, %p163
      %p165 = scmp.ne.s32.totalorder %s151, %s152
      %p166 = scmp.eq.s32.totalorder %s20, 1
      %p167 = por %p165, %p166
      %p169 = scmp.ne.s32.totalorder %s152, %s168
      %p170 = scmp.eq.s32.totalorder %s20, 0
      %p171 = por %p169, %p170
      %p172 = scmp.le.s32.totalorder 1, %s14
      %p173 = scmp.lt.s32.totalorder %s14, 3
      %p174 = pnand %p172, %p173
      %p175 = pneg %p174
      // Predicated region
      $region9: #{prenorm_linear.1} parent=5 // pred_check
        _
      $region10: #{prenorm_linear.1} parent=5 // pred_check_branch
        %177 = sbr.rel (%p174) target = $region12
      $region11: #{prenorm_linear.1} parent=5 // pred_region
        %s178 = ssub.s32 %s14, 1
        // Predicated region
        $region13: #{prenorm_linear.1} parent=11 // pred_check
          %p179 = pneg %p73
        $region14: #{prenorm_linear.1} parent=11 // pred_check_branch
          %181 = sbr.rel (%p179) target = $region16
        $region15: #{prenorm_linear.1} parent=11 // pred_region
          _
        $region16: #{prenorm_linear.1} parent=11 // pred_fallthru
          _
        // Predicated region
        $region17: #{prenorm_linear.1} parent=11 // pred_check
          %p182 = pneg %p94
        $region18: #{prenorm_linear.1} parent=11 // pred_check_branch
          %184 = sbr.rel (%p182) target = $region20
        $region19: #{prenorm_linear.1} parent=11 // pred_region
          _
        $region20: #{prenorm_linear.1} parent=11 // pred_fallthru
          _
        // Predicated region
        $region21: #{prenorm_linear.1} parent=11 // pred_check
          %p185 = pneg %p115
        $region22: #{prenorm_linear.1} parent=11 // pred_check_branch
          %187 = sbr.rel (%p185) target = $region24
        $region23: #{prenorm_linear.1} parent=11 // pred_region
          _
        $region24: #{prenorm_linear.1} parent=11 // pred_fallthru
          _
        // Predicated region
        $region25: #{prenorm_linear.1} parent=11 // pred_check
          %p188 = pneg %p136
        $region26: #{prenorm_linear.1} parent=11 // pred_check_branch
          %190 = sbr.rel (%p188) target = $region28
        $region27: #{prenorm_linear.1} parent=11 // pred_region
          _
        $region28: #{prenorm_linear.1} parent=11 // pred_fallthru
          _
      $region12: #{prenorm_linear.1} parent=5 // pred_fallthru
        _
      %p191 = scmp.lt.s32.totalorder %s14, 2
      // Predicated region
      $region29: #{prenorm_linear.1} parent=5 // pred_check
        %p192 = pneg %p191
      $region30: #{prenorm_linear.1} parent=5 // pred_check_branch
        %194 = sbr.rel (%p192) target = $region32
      $region31: #{prenorm_linear.1} parent=5 // pred_region
        // Predicated region
        $region33: #{prenorm_linear.1} parent=31 // pred_check
          %p195 = pneg %p46
        $region34: #{prenorm_linear.1} parent=31 // pred_check_branch
          %197 = sbr.rel (%p195) target = $region36
        $region35: #{prenorm_linear.1} parent=31 // pred_region
          %p198 = scmp.lt.s32.totalorder %s21, 1
          %s199 = scalar_select %p198, %s21, 1
          %s200 = smul.addr %s199, 8
          %s201 = scalar_lea.vmem %s0, %s200
        $region36: #{prenorm_linear.1} parent=31 // pred_fallthru
          _
      $region32: #{prenorm_linear.1} parent=5 // pred_fallthru
        _
      %p202 = scmp.le.s32.totalorder 1, %s14
      %p203 = scmp.lt.s32.totalorder %s14, 3
      %p204 = pnand %p202, %p203
      %p205 = pneg %p204
      // Predicated region
      $region37: #{prenorm_linear.1} parent=5 // pred_check
        _
      $region38: #{prenorm_linear.1} parent=5 // pred_check_branch
        %207 = sbr.rel (%p204) target = $region40
      $region39: #{prenorm_linear.1} parent=5 // pred_region
        %s208 = ssub.s32 %s14, 1
        %p209 = scmp.lt.s32.totalorder %s23, 1
        %s210 = scalar_select %p209, %s23, 1
        %s211 = smul.addr %s210, 8
        %s212 = scalar_lea.vmem %s0, %s211
        %p213 = pneg %p52
        %p214 = pneg %p49
        %p215 = pneg %p73
        %p216 = pneg %p70
        %p217 = pneg %p94
        %p218 = pneg %p91
        %p219 = pneg %p115
        %p220 = pneg %p112
        %p221 = pneg %p136
        %p222 = pneg %p133
        %p223 = pneg %p164
        %p224 = pneg %p161
        %s225 = sand.u32 %s151, 1
        %s226 = scalar_lea.sflag [#allocation4], %s225
        %s227 = sand.u32 %s151, 1
        %s228 = smul.addr %s227, 8
        %s229 = scalar_lea.vmem [#allocation3], %s228
        %p230 = scmp.lt.s32.totalorder %s23, 1
        %s231 = scalar_select %p230, %s23, 1
        %s232 = smul.addr %s231, 8
        %s233 = scalar_lea.vmem %s0, %s232
        %p235 = scmp.eq.s32.totalorder %s24, 0
        // Predicated region
        $region41: #{prenorm_linear.1} parent=39 // pred_check
          %p236 = pneg %p235
        $region42: #{prenorm_linear.1} parent=39 // pred_check_branch
          %238 = sbr.rel (%p236) target = $region44
        $region43: #{prenorm_linear.1} parent=39 // pred_region
          %v239 = vld [vmem:[%s233] sm:$0xff]
          %vm240 = vcmask 261120
          %v241 = vsel %vm240, %v239, 0.0
          %242 = vadd.xlane.f32.xlu0 %v241
          %v243 = vpop.xlane.xlu0 %242
          %v244 = vrcp.pop 32.0
          %v245 = vmul.f32 %v243, %v244
          %v246 = vmul.f32 %v239, %v239
          %v247 = vsel %vm240, %v246, 0.0
          %248 = vadd.xlane.f32.xlu0 %v247
          %v249 = vpop.xlane.xlu0 %248
          %v250 = vmul.f32 %v249, %v244
          %v251 = vmul.f32 %v245, %v245
          %v252 = vsub.f32 %v250, %v251
          %v253 = vmax.f32 %v252, 0.0
          %v254 = vadd.f32 %v253, 1e-05
          %v255 = vrsqrt.pop %v254
          %v256 = vsub.f32 %v239, %v245
          %v257 = vld [vmem:[%s1] sm:$0x1]
          %v259 = vlaneseq
          %v260 = vshrl.u32 %v259, 7
          %v261 = vsub.s32 0, %v260
          %v262 = vrot.slane %v257, %v261
          %v264 = vmul.f32 %v255, %v262
          %v265 = vmul.f32 %v256, %v264
          %v266 = vld [vmem:[%s2] sm:$0x1]
          %v268 = vlaneseq
          %v269 = vshrl.u32 %v268, 7
          %v270 = vsub.s32 0, %v269
          %v271 = vrot.slane %v266, %v270
          %v273 = vadd.f32 %v265, %v271
          %v274 = vpack.c.bf16 %v273, %v273
          %vm275 = vcmask 257024
          %276 = vst.msk [vmem:[#allocation2] sm:$0xf] %vm275, %v274
        $region44: #{prenorm_linear.1} parent=39 // pred_fallthru
          _
        %v277 = vld [vmem:[#allocation2] sm:$0xf]
        %v278 = vld [vmem:[%s3] sm:$0xf]
        %v279 = vld [vmem:[%s3 + $0x4] sm:$0xf]
        %v280 = vld [vmem:[%s3 + $0x8] sm:$0xf]
        %v281 = vld [vmem:[%s3 + $0xc] sm:$0xf]
        %v282 = vld [vmem:[%s4] sm:$0x1]
        %v284 = vlaneseq
        %v285 = vshrl.u32 %v284, 7
        %v286 = vsub.s32 0, %v285
        %v287 = vrot.slane %v282, %v286
        %v293 = vunpack.c.l.b16 %v278
        %v294 = vunpack.c.l.b16 %v279
        %v295 = vunpack.c.l.b16 %v280
        %v296 = vunpack.c.l.b16 %v281
        %v297 = vpack.c.b16 %v294, %v293
        %v298 = vpack.c.b16 %v296, %v295
        %vm301 = vcmask 261120
        %v303 = vsel %vm301, %v277, 0
        %305 = vmatprep.subr.bf16.mxu0 0
        %306 = vmatpush1.bf16.msra.mxu0 %v297
        %307 = vmatprep.subr.bf16.mxu0 0
        %308 = vmatpush1.bf16.msra.mxu0 %v298
        %309 = vmatprep.subr.bf16.mxu0 0
        %310 = vmatpush1.bf16.msra.mxu0 0
        %311 = vmatprep.subr.bf16.mxu0 0
        %312 = vmatpush1.bf16.msra.mxu0 0
        %313 = vmatprep.subr.bf16.mxu0 0
        %314 = vmatpush1.bf16.msra.mxu0 0
        %315 = vmatprep.subr.bf16.mxu0 0
        %316 = vmatpush1.bf16.msra.mxu0 0
        %317 = vmatprep.subr.bf16.mxu0 0
        %318 = vmatpush1.bf16.msra.mxu0 0
        %319 = vmatprep.subr.bf16.mxu0 0
        %320 = vmatpush1.bf16.msra.mxu0 0
        %321 = vmatprep.subr.bf16.mxu0 0
        %322 = vmatpush1.bf16.msra.mxu0 0
        %323 = vmatprep.subr.bf16.mxu0 0
        %324 = vmatpush1.bf16.msra.mxu0 0
        %325 = vmatprep.subr.bf16.mxu0 0
        %326 = vmatpush1.bf16.msra.mxu0 0
        %327 = vmatprep.subr.bf16.mxu0 0
        %328 = vmatpush1.bf16.msra.mxu0 0
        %329 = vmatprep.subr.bf16.mxu0 0
        %330 = vmatpush1.bf16.msra.mxu0 0
        %331 = vmatprep.subr.bf16.mxu0 0
        %332 = vmatpush1.bf16.msra.mxu0 0
        %333 = vmatprep.subr.bf16.mxu0 0
        %334 = vmatpush1.bf16.msra.mxu0 0
        %335 = vmatprep.subr.bf16.mxu0 0
        %336 = vmatpush1.bf16.msra.mxu0 0
        %337 = vmatprep.mubr.bf16.mxu0 0
        %338 = vmatmul.mubr.bf16.gmra.mrb[0].mxu0 %v303
        %v339 = vpop.f32.mrb[0].mxu0
        %v340 = vadd.f32 %v287, %v339
        %v341 = vpop.f32.mrb[0].mxu0
        %v342 = vpop.f32.mrb[0].mxu0
        %v343 = vpop.f32.mrb[0].mxu0
        %344 = vdwg.mxu0
        %345 = vst.msk [vmem:[%s229] sm:$0xff] %vm301, %v340
        %s346 = sand.u32 %s151, 1
        %s347 = scalar_lea.sflag [#allocation4], %s346
        %s348 = sand.u32 %s151, 1
        %s349 = smul.addr %s348, 8
        %s350 = scalar_lea.vmem [#allocation3], %s349
        // Predicated region
        $region45: #{prenorm_linear.1} parent=39 // pred_check
          %p351 = pneg %p161
        $region46: #{prenorm_linear.1} parent=39 // pred_check_branch
          %353 = sbr.rel (%p351) target = $region48
        $region47: #{prenorm_linear.1} parent=39 // pred_region
          %s355 = ssub.s32 128, 128
          %356 = vsyncadd %s347, %s355
          %s357 = sadd.s32 %s24, %s23
          %s358 = smul.addr %s357, 128
          %s359 = scalar_lea.hbm %s5, %s358
          %s361 = sshll.u32 %s350, 4
          %s362 = int_to_ptr.vmem [resolvable:$true] %s361
          %364 = dma.vmem_to_hbm [thread:$0]  %s362, 128, %s359, %s347
        $region48: #{prenorm_linear.1} parent=39 // pred_fallthru
          _
      $region40: #{prenorm_linear.1} parent=5 // pred_fallthru
        _
      %p365 = scmp.le.s32.totalorder 2, %s14
      // Predicated region
      $region49: #{prenorm_linear.1} parent=5 // pred_check
        %p366 = pneg %p365
      $region50: #{prenorm_linear.1} parent=5 // pred_check_branch
        %368 = sbr.rel (%p366) target = $region52
      $region51: #{prenorm_linear.1} parent=5 // pred_region
        %s369 = ssub.s32 %s14, 2
        // Predicated region
        $region53: #{prenorm_linear.1} parent=51 // pred_check
          %p370 = pneg %p167
        $region54: #{prenorm_linear.1} parent=51 // pred_check_branch
          %372 = sbr.rel (%p370) target = $region56
        $region55: #{prenorm_linear.1} parent=51 // pred_region
          %s373 = sand.u32 %s152, 1
          %s374 = scalar_lea.sflag [#allocation4], %s373
          %s375 = sand.u32 %s152, 1
          %s376 = smul.addr %s375, 8
          %s377 = scalar_lea.vmem [#allocation3], %s376
          %378 = dma.done %s374, 128
        $region56: #{prenorm_linear.1} parent=51 // pred_fallthru
          _
      $region52: #{prenorm_linear.1} parent=5 // pred_fallthru
        _
    $region6: #{prenorm_linear.1} parent=1 // loop_footer
      %s18 = sadd.s32 1, %s14
    $region7: #{prenorm_linear.1} parent=1 // loop_footer_branch
      %13 = sbr.rel target = $region3
    $region8: #{prenorm_linear.1} parent=1 // loop_exit
      _
    %379 = vsyncpa [#allocation4], 1
    %s380 = scalar_lea.sflag [#allocation4], 1
    %381 = vsyncpa %s380, 1

</llo_original>
